<compile_context>
chip_gen: v5e
topology: v5e:2x2
jax: 0.10.0
libtpu: 0.0.40
codegen_flags: <defaults>
</compile_context>

<pallas_src>
import jax
import jax.numpy as jnp
from jax.experimental import pallas as pl
from jax.experimental.pallas import tpu as pltpu


def _att_dict_kernel(f_ref, d_ref, o_ref):
    # f_ref: (bb, bn) lane-dense feature block
    # d_ref: (1, bn) or (bb, bn) matching dictionary block (broadcasts over sublanes)
    # o_ref: (bb, bn)
    o_ref[...] = f_ref[...] * d_ref[...]


def att_dictionary(features: jax.Array, dictionary: jax.Array,
                   *, block_bytes: int = 2 * 1024 * 1024,
                   min_pallas_bytes: int = 1 * 1024 * 1024,
                   force_pallas: bool = False) -> jax.Array:
    """features: (B, C, H, W); dictionary: (C, H, W). Returns features * dictionary."""
    B, C, H, W = features.shape
    assert dictionary.shape == (C, H, W)
    itemsize = jnp.dtype(features.dtype).itemsize

    # --- tiny-input fast path: kernel dispatch dominates, let XLA fuse it. ---
    if not force_pallas and features.size * itemsize < min_pallas_bytes:
        return features * dictionary[None]

    # --- lane-dense 2-D views -------------------------------------------------
    if B < 8:
        # Fold C into the sublane axis so blocks fill all 8 sublanes.
        rows, cols = B * C, H * W
        f2 = features.reshape(rows, cols)
        d2 = jnp.tile(dictionary.reshape(C, cols), (B, 1))      # (B*C, H*W)
        dict_broadcast_rows = False
    else:
        rows, cols = B, C * H * W
        f2 = features.reshape(rows, cols)
        d2 = dictionary.reshape(1, cols)                        # broadcast over rows
        dict_broadcast_rows = True

    # --- block sizes: bb (sublane/rows) x bn (lane/cols), sized together ------
    # Row block: full extent when small, otherwise 512 (multiple of 8; ragged
    # tail handled by Pallas masking).
    bb = rows if rows <= 512 else 512
    # Column block: target ~block_bytes for the features block, multiple of 128.
    if cols % 128 != 0:
        bn = cols                                               # full extent is legal
    else:
        bn = max(128, ((block_bytes // (bb * itemsize)) // 128) * 128)
        bn = min(bn, cols)

    n_col = pl.cdiv(cols, bn)
    n_row = pl.cdiv(rows, bb)
    # Lane axis OUTER, row/batch axis INNER (last grid axis iterates fastest) so
    # the dictionary block index is constant across consecutive steps.
    grid = (n_col, n_row)

    d_block_rows = 1 if dict_broadcast_rows else bb
    if dict_broadcast_rows:
        dict_index_map = lambda j, i: (0, j)    # invariant over inner axis -> reused
    else:
        dict_index_map = lambda j, i: (i, j)

    # --- dimension semantics: CORE_PARALLEL on the outer axis only when it has
    # >= 2 evenly sized steps (shards work across v7x's two TensorCores). -------
    if n_col >= 2 and n_col % 2 == 0 and cols % bn == 0:
        dim_sems = (pltpu.CORE_PARALLEL, pltpu.ARBITRARY)
    else:
        dim_sems = ("parallel", "arbitrary")

    # --- explicit VMEM budget: double-buffered in + out + dict blocks ---------
    working_set = 2 * (2 * bb * bn + d_block_rows * bn) * itemsize
    vmem_limit = int(min(32 * 1024 * 1024, max(16 * 1024 * 1024, 2 * working_set)))

    cost = pl.CostEstimate(
        flops=rows * cols,
        transcendentals=0,
        bytes_accessed=(2 * rows * cols + d2.shape[0] * cols) * itemsize,
    )

    out2 = pl.pallas_call(
        _att_dict_kernel,
        out_shape=jax.ShapeDtypeStruct((rows, cols), features.dtype),
        grid_spec=pltpu.PrefetchScalarGridSpec(
            num_scalar_prefetch=0,
            grid=grid,
            in_specs=[
                pl.BlockSpec((bb, bn), lambda j, i: (i, j)),            # features
                pl.BlockSpec((d_block_rows, bn), dict_index_map),       # dictionary
            ],
            out_specs=pl.BlockSpec((bb, bn), lambda j, i: (i, j)),
        ),
        compiler_params=pltpu.CompilerParams(
            dimension_semantics=dim_sems,
            vmem_limit_bytes=vmem_limit,
        ),
        cost_estimate=cost,
    )(f2, d2)

    return out2.reshape(B, C, H, W)


if __name__ == "__main__":
    # Module config: n_ch=4, img_size=16; batch=2.
    B, C, H = 2, 4, 16
    key = jax.random.PRNGKey(0)
    kf, kd = jax.random.split(key)

    features = jax.random.normal(kf, (B, C, H, H), dtype=jnp.float32)
    # deterministic "parameter" matching nn.Parameter(torch.randn(n_ch, img, img))
    dictionary = jax.random.normal(kd, (C, H, H), dtype=jnp.float32)
    ref = features * dictionary[None]

    # 1) Pallas kernel path (B < 8: C folded into sublanes), forced at toy size.
    out = jax.block_until_ready(att_dictionary(features, dictionary, force_pallas=True))
    assert out.shape == (B, C, H, H)
    assert jnp.allclose(out, ref, atol=1e-6), "mismatch vs reference (small-B path)"

    # 2) Pallas kernel path with B >= 8 (dictionary broadcast over rows).
    B2 = 16
    f_big = jax.random.normal(kf, (B2, C, H, H), dtype=jnp.float32)
    out_big = jax.block_until_ready(att_dictionary(f_big, dictionary, force_pallas=True))
    assert jnp.allclose(out_big, f_big * dictionary[None], atol=1e-6), \
        "mismatch vs reference (broadcast path)"

    # 3) Default wrapper path (tiny input short-circuits to XLA fusion).
    out_fast = jax.block_until_ready(att_dictionary(features, dictionary))
    assert jnp.allclose(out_fast, ref, atol=1e-6), "mismatch vs reference (fast path)"

    print("KERNEL_OK")
</pallas_src>

<mosaic_0001>
module attributes {stable_mosaic.version = 11 : i64} {
  func.func @_att_dict_kernel(%arg0: i32, %arg1: i32, %arg2: memref<8x256xf32, #tpu.memory_space<vmem>>, %arg3: memref<8x256xf32, #tpu.memory_space<vmem>>, %arg4: memref<8x256xf32, #tpu.memory_space<vmem>>) attributes {dimension_semantics = [#tpu.dimension_semantics<parallel>, #tpu.dimension_semantics<arbitrary>], iteration_bounds = array<i64: 1, 1>, scalar_prefetch = 0 : i64, scratch_operands = 0 : i64, tpu.core_type = #tpu.core_type<tc>, window_params = [{transform_indices = @transform_0, window_bounds = array<i64: 8, 256>}, {transform_indices = @transform_1, window_bounds = array<i64: 8, 256>}, {transform_indices = @transform_2, window_bounds = array<i64: 8, 256>}]} {
    %c0 = arith.constant 0 : index
    %c0_0 = arith.constant 0 : index
    %0 = vector.load %arg2[%c0, %c0_0] : memref<8x256xf32, #tpu.memory_space<vmem>>, vector<8x256xf32>
    %c0_1 = arith.constant 0 : index
    %c0_2 = arith.constant 0 : index
    %1 = vector.load %arg3[%c0_1, %c0_2] : memref<8x256xf32, #tpu.memory_space<vmem>>, vector<8x256xf32>
    %2 = arith.mulf %0, %1 : vector<8x256xf32>
    %c0_3 = arith.constant 0 : index
    %c0_4 = arith.constant 0 : index
    %3 = vector.load %arg4[%c0_3, %c0_4] : memref<8x256xf32, #tpu.memory_space<vmem>>, vector<8x256xf32>
    tpu.vector_store %arg4[%c0_3, %c0_4], %2 {strides = array<i32>} : memref<8x256xf32, #tpu.memory_space<vmem>>, vector<8x256xf32>,
    return
  }
  func.func @transform_0(%arg0: i32, %arg1: i32) -> (i32, i32) {
    %c0_i32 = arith.constant 0 : i32
    return %arg1, %arg0 : i32, i32
  }
  func.func @transform_1(%arg0: i32, %arg1: i32) -> (i32, i32) {
    %c0_i32 = arith.constant 0 : i32
    return %arg1, %arg0 : i32, i32
  }
  func.func @transform_2(%arg0: i32, %arg1: i32) -> (i32, i32) {
    %c0_i32 = arith.constant 0 : i32
    return %arg1, %arg0 : i32, i32
  }
}

</mosaic_0001>

<llo_original>
// kernel: tpu_custom_call.1
$region0: #{tpu_custom_call.1}
  #allocation0 [shape = 'u32[]', space=smem, size = 0x4, offset = 0x4, fixed_abs, tag = 'smem constant byte address 0x4 - core index']
  #allocation1 [shape = 'u32[72,128]{1,0:T(1,128)}', space=vmem, size = 0x9000, scoped, tag = 'internal scratch']
  %s0 = inlined_call_operand.hbm [shape: f32[8,256], index: 0, kind: input, shape index: {}]
  %s1 = inlined_call_operand.hbm [shape: f32[8,256], index: 1, kind: input, shape index: {}]
  %s2 = inlined_call_operand.hbm [shape: f32[8,256], index: 2, kind: output, shape index: {}]
  %s3 = sld [smem:[#allocation0]]
  $region26: #{tpu_custom_call.1} parent=0
    _
  %s5 = ssub.s32 1, %s3
  %s6 = scalar_select 0, %s5, %s3
  $region1: #{tpu_custom_call.1} parent=0
    #allocation2 [shape = 'u8[8192]{0}', space=vmem, size = 0x2000, scoped, tag = 'input window, operand 0, single buffered']
    #allocation3 [shape = 's32[1]{0}', space=sflag, size = 0x4, scoped, tag = 'scoped memory for tpu_custom_call.1']
    #allocation4 [shape = 's32[1]{0}', space=sflag, size = 0x4, scoped, tag = 'scoped memory for tpu_custom_call.1']
    #allocation5 [shape = 'u8[8192]{0}', space=vmem, size = 0x2000, scoped, tag = 'input window, operand 1, single buffered']
    #allocation6 [shape = 's32[1]{0}', space=sflag, size = 0x4, scoped, tag = 'scoped memory for tpu_custom_call.1']
    #allocation7 [shape = 'u8[8192]{0}', space=vmem, size = 0x2000, scoped, tag = 'output window, operand 0, single buffered']
    %7 = vsyncpa [#allocation3], 0
    %8 = vsyncpa [#allocation6], 0
    %9 = vsyncpa [#allocation4], 0
    // Predicated region
    $region2: #{tpu_custom_call.1} parent=1 // pred_check
      _
    $region3: #{tpu_custom_call.1} parent=1 // pred_check_branch
      %11 = sbr.rel (0) target = $region5
    $region4: #{tpu_custom_call.1} parent=1 // pred_region
      %13 = vsyncadd [#allocation3], 0
      %s15 = sshll.u32 %s0, 4
      %s16 = int_to_ptr.hbm [resolvable:$true] %s15
      %s17 = sshll.u32 [#allocation2], 4
      %s18 = int_to_ptr.vmem [resolvable:$true] %s17
      %20 = dma.hbm_to_vmem [thread:$0]  %s16, 256, %s18, [#allocation3]
    $region5: #{tpu_custom_call.1} parent=1 // pred_fallthru
      _
    // Predicated region
    $region6: #{tpu_custom_call.1} parent=1 // pred_check
      _
    $region7: #{tpu_custom_call.1} parent=1 // pred_check_branch
      %22 = sbr.rel (0) target = $region9
    $region8: #{tpu_custom_call.1} parent=1 // pred_region
      %24 = vsyncadd [#allocation6], 0
      %s26 = sshll.u32 %s1, 4
      %s27 = int_to_ptr.hbm [resolvable:$true] %s26
      %s28 = sshll.u32 [#allocation5], 4
      %s29 = int_to_ptr.vmem [resolvable:$true] %s28
      %31 = dma.hbm_to_vmem [thread:$0]  %s27, 256, %s29, [#allocation6]
    $region9: #{tpu_custom_call.1} parent=1 // pred_fallthru
      _
    // Predicated region
    $region10: #{tpu_custom_call.1} parent=1 // pred_check
      _
    $region11: #{tpu_custom_call.1} parent=1 // pred_check_branch
      %33 = sbr.rel (0) target = $region13
    $region12: #{tpu_custom_call.1} parent=1 // pred_region
      %35 = dma.done [#allocation3], 256
    $region13: #{tpu_custom_call.1} parent=1 // pred_fallthru
      _
    // Predicated region
    $region14: #{tpu_custom_call.1} parent=1 // pred_check
      _
    $region15: #{tpu_custom_call.1} parent=1 // pred_check_branch
      %37 = sbr.rel (0) target = $region17
    $region16: #{tpu_custom_call.1} parent=1 // pred_region
      %39 = dma.done [#allocation6], 256
    $region17: #{tpu_custom_call.1} parent=1 // pred_fallthru
      _
    %v40 = vld [vmem:[#allocation2] sm:$0xff]
    %v41 = vld [vmem:[#allocation2 + $0x8] sm:$0xff]
    %v42 = vld [vmem:[#allocation5] sm:$0xff]
    %v43 = vld [vmem:[#allocation5 + $0x8] sm:$0xff]
    %v44 = vmul.f32 %v40, %v42
    %v45 = vmul.f32 %v41, %v43
    %46 = vst [vmem:[#allocation7] sm:$0xff] %v44
    %47 = vst [vmem:[#allocation7 + $0x8] sm:$0xff] %v45
    // Predicated region
    $region18: #{tpu_custom_call.1} parent=1 // pred_check
      _
    $region19: #{tpu_custom_call.1} parent=1 // pred_check_branch
      %49 = sbr.rel (0) target = $region21
    $region20: #{tpu_custom_call.1} parent=1 // pred_region
      %51 = vsyncadd [#allocation4], 0
      %s53 = sshll.u32 [#allocation7], 4
      %s54 = int_to_ptr.vmem [resolvable:$true] %s53
      %s55 = sshll.u32 %s2, 4
      %s56 = int_to_ptr.hbm [resolvable:$true] %s55
      %58 = dma.vmem_to_hbm [thread:$0]  %s54, 256, %s56, [#allocation4]
    $region21: #{tpu_custom_call.1} parent=1 // pred_fallthru
      _
    // Predicated region
    $region22: #{tpu_custom_call.1} parent=1 // pred_check
      _
    $region23: #{tpu_custom_call.1} parent=1 // pred_check_branch
      %60 = sbr.rel (0) target = $region25
    $region24: #{tpu_custom_call.1} parent=1 // pred_region
      %62 = dma.done [#allocation4], 256
    $region25: #{tpu_custom_call.1} parent=1 // pred_fallthru
      _
    %63 = vsyncpa [#allocation3], 1
    %64 = vsyncpa [#allocation6], 1
    %65 = vsyncpa [#allocation4], 1

</llo_original>
